<compile_context>
chip_gen: v6e
topology: v6e:2x2x1
jax: 0.10.0
libtpu: 0.0.40
codegen_flags: <defaults>
</compile_context>

<pallas_src>
import jax
import jax.numpy as jnp
from jax.experimental import pallas as pl
from jax.experimental.pallas import tpu as pltpu

# ---------------- model hyper-parameters (small, consistent with module) -----
MIXED_DICT_LEN = 128   # mixedDictLen (vocab)
EMBED_LEN      = 32    # embedLen
HIDDEN_NUM     = 64    # hiddenNum
HIDDEN_PAD     = 128   # hidden padded to full lane width (exact, zero padding)
BATCH          = 2
SEQ            = 8


def rnn_ce_kernel(x_ref, tgt_ref, wih_ref, whh_ref, bias_ref,
                  wcls_ref, bcls_ref, loss_ref):
    """Input projection + unrolled RNN recurrence + batched classifier + CE loss.

    x_ref    : (T*B, E)   time-major flattened embedded inputs
    tgt_ref  : (T*B, 1)   int32 targets (time-major flattened)
    wih_ref  : (E, Hp)    W_ih^T, zero-padded to Hp
    whh_ref  : (Hp, Hp)   W_hh^T, zero-padded
    bias_ref : (1, Hp)    b_ih + b_hh, zero-padded
    wcls_ref : (Hp, V)    W_cls^T, zero-padded rows
    bcls_ref : (1, V)
    loss_ref : (1, 1)
    """
    TB = SEQ * BATCH

    # 1) input projection hoisted out of the recurrence: one batched matmul,
    #    both RNN biases folded in.
    x_proj = (jnp.dot(x_ref[...], wih_ref[...],
                      preferred_element_type=jnp.float32)
              + bias_ref[...])                                     # (T*B, Hp)

    whh = whh_ref[...]                                             # (Hp, Hp)

    # 2) recurrence, fully unrolled (T=8 fixed): only matmul + tanh on the
    #    serial path.
    h = jnp.zeros((BATCH, HIDDEN_PAD), jnp.float32)
    hs = []
    for t in range(SEQ):
        xt = x_proj[t * BATCH:(t + 1) * BATCH, :]                  # (B, Hp) static slice
        h = jnp.tanh(xt + jnp.dot(h, whh,
                                  preferred_element_type=jnp.float32))
        hs.append(h)
    h_all = jnp.concatenate(hs, axis=0)                            # (T*B, Hp)

    # 3) classifier + cross-entropy, batched once over all T*B rows.
    logits = (jnp.dot(h_all, wcls_ref[...],
                      preferred_element_type=jnp.float32)
              + bcls_ref[...])                                     # (T*B, V)
    m = jnp.max(logits, axis=-1, keepdims=True)                    # (T*B, 1)
    lse = m + jnp.log(jnp.sum(jnp.exp(logits - m), axis=-1, keepdims=True))
    lane_ids = jax.lax.broadcasted_iota(jnp.int32, logits.shape, 1)
    tgt_logit = jnp.sum(jnp.where(lane_ids == tgt_ref[...], logits, 0.0),
                        axis=-1, keepdims=True)                    # (T*B, 1)

    # CrossEntropyLoss reduction='mean' over T*B elements
    loss_ref[...] = jnp.sum(lse - tgt_logit, axis=0, keepdims=True) / float(TB)


def my_model_loss(batch_eng, batch_chi, params):
    """Pallas-backed equivalent of MyModel.forward(batchEng, batchChi) -> loss."""
    B, T = batch_eng.shape
    V = MIXED_DICT_LEN
    H, Hp = HIDDEN_NUM, HIDDEN_PAD

    # wrapper glue: embedding gather, time-major flatten, int32 targets
    x_emb = jnp.take(params["emb"], batch_eng.T.reshape(-1), axis=0)   # (T*B, E)
    tgt = batch_chi.T.reshape(-1, 1).astype(jnp.int32)                 # (T*B, 1)

    # pre-transposed, zero-padded weights; biases folded
    wih = jnp.zeros((EMBED_LEN, Hp), jnp.float32).at[:, :H].set(params["w_ih"].T)
    whh = jnp.zeros((Hp, Hp), jnp.float32).at[:H, :H].set(params["w_hh"].T)
    bias = jnp.zeros((1, Hp), jnp.float32).at[0, :H].set(params["b_ih"] + params["b_hh"])
    wcls = jnp.zeros((Hp, V), jnp.float32).at[:H, :].set(params["w_cls"].T)
    bcls = params["b_cls"].reshape(1, -1)

    vmem = pl.BlockSpec(memory_space=pltpu.MemorySpace.VMEM)
    out = pl.pallas_call(
        rnn_ce_kernel,
        out_shape=jax.ShapeDtypeStruct((1, 1), jnp.float32),
        in_specs=[vmem] * 7,
        out_specs=vmem,
    )(x_emb, tgt, wih, whh, bias, wcls, bcls)
    return out[0, 0]


def reference_loss(batch_eng, batch_chi, params):
    """Pure-JAX reference of the same forward, for a sanity check."""
    B, T = batch_eng.shape
    embed = jnp.take(params["emb"], batch_eng, axis=0)              # (B, T, E)
    h = jnp.zeros((B, HIDDEN_NUM), jnp.float32)
    hs = []
    for t in range(T):
        x_t = embed[:, t, :]
        h = jnp.tanh(x_t @ params["w_ih"].T + params["b_ih"]
                     + h @ params["w_hh"].T + params["b_hh"])
        hs.append(h)
    h1 = jnp.stack(hs, axis=1)                                      # (B, T, H)
    pre = h1 @ params["w_cls"].T + params["b_cls"]                  # (B, T, V)
    logits = pre.reshape(B * T, -1)
    tgt = batch_chi.reshape(-1)
    logz = jax.scipy.special.logsumexp(logits, axis=-1)
    tgt_logit = jnp.take_along_axis(logits, tgt[:, None], axis=-1)[:, 0]
    return jnp.mean(logz - tgt_logit)


def init_params(key):
    ks = jax.random.split(key, 7)
    s = 0.1
    return {
        "emb":   s * jax.random.normal(ks[0], (MIXED_DICT_LEN, EMBED_LEN), jnp.float32),
        "w_ih":  s * jax.random.normal(ks[1], (HIDDEN_NUM, EMBED_LEN), jnp.float32),
        "w_hh":  s * jax.random.normal(ks[2], (HIDDEN_NUM, HIDDEN_NUM), jnp.float32),
        "b_ih":  s * jax.random.normal(ks[3], (HIDDEN_NUM,), jnp.float32),
        "b_hh":  s * jax.random.normal(ks[4], (HIDDEN_NUM,), jnp.float32),
        "w_cls": s * jax.random.normal(ks[5], (MIXED_DICT_LEN, HIDDEN_NUM), jnp.float32),
        "b_cls": s * jax.random.normal(ks[6], (MIXED_DICT_LEN,), jnp.float32),
    }


if __name__ == "__main__":
    key = jax.random.PRNGKey(0)
    k_eng, k_chi, k_par = jax.random.split(key, 3)

    batch_eng = jax.random.randint(k_eng, (BATCH, SEQ), 0, MIXED_DICT_LEN, jnp.int32)
    batch_chi = jax.random.randint(k_chi, (BATCH, SEQ), 0, MIXED_DICT_LEN, jnp.int32)
    params = init_params(k_par)

    loss = jax.block_until_ready(my_model_loss(batch_eng, batch_chi, params))
    ref = jax.block_until_ready(reference_loss(batch_eng, batch_chi, params))

    assert jnp.isfinite(loss), "non-finite loss"
    assert abs(float(loss) - float(ref)) < 2e-2, (float(loss), float(ref))
    print("KERNEL_OK")
</pallas_src>

<mosaic_0001>
module attributes {stable_mosaic.version = 11 : i64} {
  func.func @rnn_ce_kernel(%arg0: memref<16x32xf32, #tpu.memory_space<vmem>>, %arg1: memref<16x1xi32, #tpu.memory_space<vmem>>, %arg2: memref<32x128xf32, #tpu.memory_space<vmem>>, %arg3: memref<128x128xf32, #tpu.memory_space<vmem>>, %arg4: memref<1x128xf32, #tpu.memory_space<vmem>>, %arg5: memref<128x128xf32, #tpu.memory_space<vmem>>, %arg6: memref<1x128xf32, #tpu.memory_space<vmem>>, %arg7: memref<1x1xf32, #tpu.memory_space<vmem>>) attributes {dimension_semantics = [], scalar_prefetch = 0 : i64, scratch_operands = 0 : i64, tpu.core_type = #tpu.core_type<tc>} {
    %c0 = arith.constant 0 : index
    %c0_0 = arith.constant 0 : index
    %0 = vector.load %arg0[%c0, %c0_0] : memref<16x32xf32, #tpu.memory_space<vmem>>, vector<16x32xf32>
    %c0_1 = arith.constant 0 : index
    %c0_2 = arith.constant 0 : index
    %1 = vector.load %arg2[%c0_1, %c0_2] : memref<32x128xf32, #tpu.memory_space<vmem>>, vector<32x128xf32>
    %cst = arith.constant dense<0.000000e+00> : vector<16x128xf32>
    %2 = tpu.matmul %0, %1, %cst {dimension_numbers = #tpu.dot_dimension_numbers<[1], [0], [0], [1], [0, 0, 1, 1], [], []>} : vector<16x32xf32>, vector<32x128xf32>, vector<16x128xf32> -> vector<16x128xf32>
    %c0_3 = arith.constant 0 : index
    %c0_4 = arith.constant 0 : index
    %3 = vector.load %arg4[%c0_3, %c0_4] : memref<1x128xf32, #tpu.memory_space<vmem>>, vector<1x128xf32>
    %4 = vector.broadcast %3 : vector<1x128xf32> to vector<16x128xf32>
    %5 = arith.addf %2, %4 : vector<16x128xf32>
    %c0_5 = arith.constant 0 : index
    %c0_6 = arith.constant 0 : index
    %6 = vector.load %arg3[%c0_5, %c0_6] : memref<128x128xf32, #tpu.memory_space<vmem>>, vector<128x128xf32>
    %cst_7 = arith.constant 0.000000e+00 : f32
    %7 = vector.broadcast %cst_7 : f32 to vector<2x128xf32>
    %8 = vector.extract_strided_slice %5 {offsets = [0, 0], sizes = [2, 128], strides = [1, 1]} : vector<16x128xf32> to vector<2x128xf32>
    %cst_8 = arith.constant dense<0.000000e+00> : vector<2x128xf32>
    %9 = tpu.matmul %7, %6, %cst_8 {dimension_numbers = #tpu.dot_dimension_numbers<[1], [0], [0], [1], [0, 0, 1, 1], [], []>} : vector<2x128xf32>, vector<128x128xf32>, vector<2x128xf32> -> vector<2x128xf32>
    %10 = arith.addf %8, %9 : vector<2x128xf32>
    %11 = math.tanh %10 : vector<2x128xf32>
    %12 = vector.extract_strided_slice %5 {offsets = [2, 0], sizes = [2, 128], strides = [1, 1]} : vector<16x128xf32> to vector<2x128xf32>
    %cst_9 = arith.constant dense<0.000000e+00> : vector<2x128xf32>
    %13 = tpu.matmul %11, %6, %cst_9 {dimension_numbers = #tpu.dot_dimension_numbers<[1], [0], [0], [1], [0, 0, 1, 1], [], []>} : vector<2x128xf32>, vector<128x128xf32>, vector<2x128xf32> -> vector<2x128xf32>
    %14 = arith.addf %12, %13 : vector<2x128xf32>
    %15 = math.tanh %14 : vector<2x128xf32>
    %16 = vector.extract_strided_slice %5 {offsets = [4, 0], sizes = [2, 128], strides = [1, 1]} : vector<16x128xf32> to vector<2x128xf32>
    %cst_10 = arith.constant dense<0.000000e+00> : vector<2x128xf32>
    %17 = tpu.matmul %15, %6, %cst_10 {dimension_numbers = #tpu.dot_dimension_numbers<[1], [0], [0], [1], [0, 0, 1, 1], [], []>} : vector<2x128xf32>, vector<128x128xf32>, vector<2x128xf32> -> vector<2x128xf32>
    %18 = arith.addf %16, %17 : vector<2x128xf32>
    %19 = math.tanh %18 : vector<2x128xf32>
    %20 = vector.extract_strided_slice %5 {offsets = [6, 0], sizes = [2, 128], strides = [1, 1]} : vector<16x128xf32> to vector<2x128xf32>
    %cst_11 = arith.constant dense<0.000000e+00> : vector<2x128xf32>
    %21 = tpu.matmul %19, %6, %cst_11 {dimension_numbers = #tpu.dot_dimension_numbers<[1], [0], [0], [1], [0, 0, 1, 1], [], []>} : vector<2x128xf32>, vector<128x128xf32>, vector<2x128xf32> -> vector<2x128xf32>
    %22 = arith.addf %20, %21 : vector<2x128xf32>
    %23 = math.tanh %22 : vector<2x128xf32>
    %24 = vector.extract_strided_slice %5 {offsets = [8, 0], sizes = [2, 128], strides = [1, 1]} : vector<16x128xf32> to vector<2x128xf32>
    %cst_12 = arith.constant dense<0.000000e+00> : vector<2x128xf32>
    %25 = tpu.matmul %23, %6, %cst_12 {dimension_numbers = #tpu.dot_dimension_numbers<[1], [0], [0], [1], [0, 0, 1, 1], [], []>} : vector<2x128xf32>, vector<128x128xf32>, vector<2x128xf32> -> vector<2x128xf32>
    %26 = arith.addf %24, %25 : vector<2x128xf32>
    %27 = math.tanh %26 : vector<2x128xf32>
    %28 = vector.extract_strided_slice %5 {offsets = [10, 0], sizes = [2, 128], strides = [1, 1]} : vector<16x128xf32> to vector<2x128xf32>
    %cst_13 = arith.constant dense<0.000000e+00> : vector<2x128xf32>
    %29 = tpu.matmul %27, %6, %cst_13 {dimension_numbers = #tpu.dot_dimension_numbers<[1], [0], [0], [1], [0, 0, 1, 1], [], []>} : vector<2x128xf32>, vector<128x128xf32>, vector<2x128xf32> -> vector<2x128xf32>
    %30 = arith.addf %28, %29 : vector<2x128xf32>
    %31 = math.tanh %30 : vector<2x128xf32>
    %32 = vector.extract_strided_slice %5 {offsets = [12, 0], sizes = [2, 128], strides = [1, 1]} : vector<16x128xf32> to vector<2x128xf32>
    %cst_14 = arith.constant dense<0.000000e+00> : vector<2x128xf32>
    %33 = tpu.matmul %31, %6, %cst_14 {dimension_numbers = #tpu.dot_dimension_numbers<[1], [0], [0], [1], [0, 0, 1, 1], [], []>} : vector<2x128xf32>, vector<128x128xf32>, vector<2x128xf32> -> vector<2x128xf32>
    %34 = arith.addf %32, %33 : vector<2x128xf32>
    %35 = math.tanh %34 : vector<2x128xf32>
    %36 = vector.extract_strided_slice %5 {offsets = [14, 0], sizes = [2, 128], strides = [1, 1]} : vector<16x128xf32> to vector<2x128xf32>
    %cst_15 = arith.constant dense<0.000000e+00> : vector<2x128xf32>
    %37 = tpu.matmul %35, %6, %cst_15 {dimension_numbers = #tpu.dot_dimension_numbers<[1], [0], [0], [1], [0, 0, 1, 1], [], []>} : vector<2x128xf32>, vector<128x128xf32>, vector<2x128xf32> -> vector<2x128xf32>
    %38 = arith.addf %36, %37 : vector<2x128xf32>
    %39 = math.tanh %38 : vector<2x128xf32>
    %40 = tpu.concatenate %11, %15, %19, %23, %27, %31, %35, %39 in 0 : vector<2x128xf32>, vector<2x128xf32>, vector<2x128xf32>, vector<2x128xf32>, vector<2x128xf32>, vector<2x128xf32>, vector<2x128xf32>, vector<2x128xf32> -> vector<16x128xf32>
    %c0_16 = arith.constant 0 : index
    %c0_17 = arith.constant 0 : index
    %41 = vector.load %arg5[%c0_16, %c0_17] : memref<128x128xf32, #tpu.memory_space<vmem>>, vector<128x128xf32>
    %cst_18 = arith.constant dense<0.000000e+00> : vector<16x128xf32>
    %42 = tpu.matmul %40, %41, %cst_18 {dimension_numbers = #tpu.dot_dimension_numbers<[1], [0], [0], [1], [0, 0, 1, 1], [], []>} : vector<16x128xf32>, vector<128x128xf32>, vector<16x128xf32> -> vector<16x128xf32>
    %c0_19 = arith.constant 0 : index
    %c0_20 = arith.constant 0 : index
    %43 = vector.load %arg6[%c0_19, %c0_20] : memref<1x128xf32, #tpu.memory_space<vmem>>, vector<1x128xf32>
    %44 = vector.broadcast %43 : vector<1x128xf32> to vector<16x128xf32>
    %45 = arith.addf %42, %44 : vector<16x128xf32>
    %cst_21 = arith.constant dense<0xFF800000> : vector<16xf32>
    %46 = vector.multi_reduction <maximumf>, %45, %cst_21 [1] : vector<16x128xf32> to vector<16xf32>
    %47 = vector.shape_cast %46 : vector<16xf32> to vector<16x1xf32>
    %48 = vector.broadcast %47 : vector<16x1xf32> to vector<16x128xf32>
    %49 = arith.subf %45, %48 : vector<16x128xf32>
    %50 = math.exp %49 : vector<16x128xf32>
    %cst_22 = arith.constant dense<0.000000e+00> : vector<16xf32>
    %51 = vector.multi_reduction <add>, %50, %cst_22 [1] : vector<16x128xf32> to vector<16xf32>
    %52 = vector.shape_cast %51 : vector<16xf32> to vector<16x1xf32>
    %53 = math.log %52 : vector<16x1xf32>
    %54 = arith.addf %47, %53 : vector<16x1xf32>
    %55 = tpu.iota {dimensions = array<i32: 1>} : vector<16x128xi32>
    %c0_23 = arith.constant 0 : index
    %c0_24 = arith.constant 0 : index
    %56 = vector.load %arg1[%c0_23, %c0_24] : memref<16x1xi32, #tpu.memory_space<vmem>>, vector<16x1xi32>
    %57 = vector.broadcast %56 : vector<16x1xi32> to vector<16x128xi32>
    %58 = arith.cmpi eq, %55, %57 : vector<16x128xi32>
    %cst_25 = arith.constant 0.000000e+00 : f32
    %59 = vector.broadcast %cst_25 : f32 to vector<16x128xf32>
    %60 = arith.select %58, %45, %59 : vector<16x128xi1>, vector<16x128xf32>
    %cst_26 = arith.constant dense<0.000000e+00> : vector<16xf32>
    %61 = vector.multi_reduction <add>, %60, %cst_26 [1] : vector<16x128xf32> to vector<16xf32>
    %62 = vector.shape_cast %61 : vector<16xf32> to vector<16x1xf32>
    %63 = arith.subf %54, %62 : vector<16x1xf32>
    %cst_27 = arith.constant dense<0.000000e+00> : vector<1xf32>
    %64 = vector.multi_reduction <add>, %63, %cst_27 [0] : vector<16x1xf32> to vector<1xf32>
    %65 = vector.shape_cast %64 : vector<1xf32> to vector<1x1xf32>
    %cst_28 = arith.constant 1.600000e+01 : f32
    %66 = vector.broadcast %cst_28 : f32 to vector<1x1xf32>
    %67 = arith.divf %65, %66 : vector<1x1xf32>
    %c0_29 = arith.constant 0 : index
    %c0_30 = arith.constant 0 : index
    %68 = vector.load %arg7[%c0_29, %c0_30] : memref<1x1xf32, #tpu.memory_space<vmem>>, vector<1x1xf32>
    tpu.vector_store %arg7[%c0_29, %c0_30], %67 {strides = array<i32>} : memref<1x1xf32, #tpu.memory_space<vmem>>, vector<1x1xf32>,
    return
  }
}

</mosaic_0001>

<llo_original>
// kernel: tpu_custom_call.1
$region0: #{tpu_custom_call.1}
  #allocation0 [shape = 'u32[]', space=smem, size = 0x4, offset = 0x4, fixed_abs, tag = 'smem constant byte address 0x4 - core index']
  #allocation1 [shape = 'u32[144,128]{1,0:T(1,128)}', space=vmem, size = 0x12000, scoped, tag = 'internal scratch']
  %s0 = inlined_call_operand.vmem [shape: f32[16,32], index: 0, kind: input, shape index: {}]
  %s1 = inlined_call_operand.vmem [shape: s32[16,1], index: 1, kind: input, shape index: {}]
  %s2 = inlined_call_operand.hbm [shape: f32[32,128], index: 2, kind: input, shape index: {}]
  %s3 = inlined_call_operand.hbm [shape: f32[128,128], index: 3, kind: input, shape index: {}]
  %s4 = inlined_call_operand.vmem [shape: f32[1,128], index: 4, kind: input, shape index: {}]
  %s5 = inlined_call_operand.hbm [shape: f32[128,128], index: 5, kind: input, shape index: {}]
  %s6 = inlined_call_operand.vmem [shape: f32[1,128], index: 6, kind: input, shape index: {}]
  %s7 = inlined_call_operand.hbm [shape: f32[1,1], index: 7, kind: output, shape index: {}]
  %s8 = sld [smem:[#allocation0]]
  $region50: #{tpu_custom_call.1} parent=0
    _
  %s10 = ssub.s32 1, %s8
  %s11 = scalar_select 0, %s10, %s8
  $region1: #{tpu_custom_call.1} parent=0
    #allocation2 [shape = 'u8[16384]{0}', space=vmem, size = 0x4000, scoped, tag = 'input window, operand 2, single buffered']
    #allocation3 [shape = 's32[1]{0}', space=sflag, size = 0x4, scoped, tag = 'scoped memory for tpu_custom_call.1']
    #allocation4 [shape = 's32[1]{0}', space=sflag, size = 0x4, scoped, tag = 'scoped memory for tpu_custom_call.1']
    #allocation5 [shape = 'u8[65536]{0}', space=vmem, size = 0x10000, scoped, tag = 'input window, operand 3, single buffered']
    #allocation6 [shape = 's32[1]{0}', space=sflag, size = 0x4, scoped, tag = 'scoped memory for tpu_custom_call.1']
    #allocation7 [shape = 'u8[65536]{0}', space=vmem, size = 0x10000, scoped, tag = 'input window, operand 5, single buffered']
    #allocation8 [shape = 'u8[512]{0}', space=vmem, size = 0x400, scoped, tag = 'output window, operand 0, single buffered']
    %12 = vsyncpa [#allocation3], 0
    %13 = vsyncpa [#allocation6], 0
    %14 = vsyncpa [#allocation4], 0
    // Predicated region
    $region2: #{tpu_custom_call.1} parent=1 // pred_check
      _
    $region3: #{tpu_custom_call.1} parent=1 // pred_check_branch
      %16 = sbr.rel (0) target = $region5
    $region4: #{tpu_custom_call.1} parent=1 // pred_region
      _
    $region5: #{tpu_custom_call.1} parent=1 // pred_fallthru
      _
    // Predicated region
    $region6: #{tpu_custom_call.1} parent=1 // pred_check
      _
    $region7: #{tpu_custom_call.1} parent=1 // pred_check_branch
      %18 = sbr.rel (0) target = $region9
    $region8: #{tpu_custom_call.1} parent=1 // pred_region
      _
    $region9: #{tpu_custom_call.1} parent=1 // pred_fallthru
      _
    // Predicated region
    $region10: #{tpu_custom_call.1} parent=1 // pred_check
      _
    $region11: #{tpu_custom_call.1} parent=1 // pred_check_branch
      %20 = sbr.rel (0) target = $region13
    $region12: #{tpu_custom_call.1} parent=1 // pred_region
      %s22 = ssub.s32 512, 512
      %23 = vsyncadd [#allocation3], %s22
      %s24 = sshll.u32 [#allocation2], 4
      %s25 = int_to_ptr.vmem [resolvable:$true] %s24
      %30 = dma.hbm_to_vmem [thread:$0]  %s2, 512, %s25, [#allocation3], 128, 128, 8
    $region13: #{tpu_custom_call.1} parent=1 // pred_fallthru
      _
    // Predicated region
    $region14: #{tpu_custom_call.1} parent=1 // pred_check
      _
    $region15: #{tpu_custom_call.1} parent=1 // pred_check_branch
      %32 = sbr.rel (0) target = $region17
    $region16: #{tpu_custom_call.1} parent=1 // pred_region
      %s34 = ssub.s32 2048, 2048
      %35 = vsyncadd [#allocation6], %s34
      %s36 = sshll.u32 [#allocation5], 4
      %s37 = int_to_ptr.vmem [resolvable:$true] %s36
      %42 = dma.hbm_to_vmem [thread:$0]  %s3, 2048, %s37, [#allocation6], 128, 128, 8
    $region17: #{tpu_custom_call.1} parent=1 // pred_fallthru
      _
    // Predicated region
    $region18: #{tpu_custom_call.1} parent=1 // pred_check
      _
    $region19: #{tpu_custom_call.1} parent=1 // pred_check_branch
      %44 = sbr.rel (0) target = $region21
    $region20: #{tpu_custom_call.1} parent=1 // pred_region
      _
    $region21: #{tpu_custom_call.1} parent=1 // pred_fallthru
      _
    // Predicated region
    $region22: #{tpu_custom_call.1} parent=1 // pred_check
      _
    $region23: #{tpu_custom_call.1} parent=1 // pred_check_branch
      %46 = sbr.rel (0) target = $region25
    $region24: #{tpu_custom_call.1} parent=1 // pred_region
      %s48 = ssub.s32 2048, 2048
      %49 = vsyncadd [#allocation6], %s48
      %s50 = sshll.u32 [#allocation7], 4
      %s51 = int_to_ptr.vmem [resolvable:$true] %s50
      %56 = dma.hbm_to_vmem [thread:$0]  %s5, 2048, %s51, [#allocation6], 128, 128, 8
    $region25: #{tpu_custom_call.1} parent=1 // pred_fallthru
      _
    // Predicated region
    $region26: #{tpu_custom_call.1} parent=1 // pred_check
      _
    $region27: #{tpu_custom_call.1} parent=1 // pred_check_branch
      %58 = sbr.rel (0) target = $region29
    $region28: #{tpu_custom_call.1} parent=1 // pred_region
      _
    $region29: #{tpu_custom_call.1} parent=1 // pred_fallthru
      _
    // Predicated region
    $region30: #{tpu_custom_call.1} parent=1 // pred_check
      _
    $region31: #{tpu_custom_call.1} parent=1 // pred_check_branch
      %60 = sbr.rel (0) target = $region33
    $region32: #{tpu_custom_call.1} parent=1 // pred_region
      %61 = dma.done [#allocation3], 512
    $region33: #{tpu_custom_call.1} parent=1 // pred_fallthru
      _
    // Predicated region
    $region34: #{tpu_custom_call.1} parent=1 // pred_check
      _
    $region35: #{tpu_custom_call.1} parent=1 // pred_check_branch
      %63 = sbr.rel (0) target = $region37
    $region36: #{tpu_custom_call.1} parent=1 // pred_region
      %64 = dma.done [#allocation6], 2048
    $region37: #{tpu_custom_call.1} parent=1 // pred_fallthru
      _
    // Predicated region
    $region38: #{tpu_custom_call.1} parent=1 // pred_check
      _
    $region39: #{tpu_custom_call.1} parent=1 // pred_check_branch
      %66 = sbr.rel (0) target = $region41
    $region40: #{tpu_custom_call.1} parent=1 // pred_region
      %67 = dma.done [#allocation6], 2048
    $region41: #{tpu_custom_call.1} parent=1 // pred_fallthru
      _
    %v68 = vld [vmem:[%s0] sm:$0xff]
    %v69 = vld [vmem:[%s0 + $0x8] sm:$0xff]
    %v70 = vld [vmem:[#allocation2] sm:$0xff]
    %v71 = vld [vmem:[#allocation2 + $0x8] sm:$0xff]
    %v72 = vld [vmem:[#allocation2 + $0x10] sm:$0xff]
    %v73 = vld [vmem:[#allocation2 + $0x18] sm:$0xff]
    %v74 = vld [vmem:[%s4] sm:$0x1]
    %v76 = vlaneseq
    %v77 = vshrl.u32 %v76, 7
    %v78 = vsub.s32 0, %v77
    %v79 = vrot.slane %v74, %v78
    %vm81 = vcmask 261120
    %v83 = vsel %vm81, %v68, 0
    %v86 = vsel %vm81, %v69, 0
    %88 = vmatprep.subr.mxu0 0.0
    %89 = vmatpush1.msra.mxu0 0.0
    %90 = vmatprep.subr.mxu0 0.0
    %91 = vmatpush1.msra.mxu0 0.0
    %92 = vmatprep.subr.mxu0 0.0
    %93 = vmatpush1.msra.mxu0 0.0
    %94 = vmatprep.subr.mxu0 0.0
    %95 = vmatpush1.msra.mxu0 0.0
    %96 = vmatprep.subr.mxu0 0.0
    %97 = vmatpush1.msra.mxu0 0.0
    %98 = vmatprep.subr.mxu0 0.0
    %99 = vmatpush1.msra.mxu0 0.0
    %100 = vmatprep.subr.mxu0 0.0
    %101 = vmatpush1.msra.mxu0 0.0
    %102 = vmatprep.subr.mxu0 0.0
    %103 = vmatpush1.msra.mxu0 0.0
    %104 = vmatprep.subr.mxu0 0.0
    %105 = vmatpush1.msra.mxu0 0.0
    %106 = vmatprep.subr.mxu0 0.0
    %107 = vmatpush1.msra.mxu0 0.0
    %108 = vmatprep.subr.mxu0 0.0
    %109 = vmatpush1.msra.mxu0 0.0
    %110 = vmatprep.subr.mxu0 0.0
    %111 = vmatpush1.msra.mxu0 0.0
    %112 = vmatprep.subr.mxu0 0.0
    %113 = vmatpush1.msra.mxu0 %v73
    %114 = vmatprep.subr.mxu0 0.0
    %115 = vmatpush1.msra.mxu0 %v72
    %116 = vmatprep.subr.mxu0 0.0
    %117 = vmatpush1.msra.mxu0 %v71
    %118 = vmatprep.subr.mxu0 0.0
    %119 = vmatpush1.msra.mxu0 %v70
    %120 = vmatprep.subr.mxu0 0.0
    %121 = vmatpush2.msra.mxu0 0.0
    %122 = vmatprep.subr.mxu0 0.0
    %123 = vmatpush2.msra.mxu0 0.0
    %124 = vmatprep.subr.mxu0 0.0
    %125 = vmatpush2.msra.mxu0 0.0
    %126 = vmatprep.subr.mxu0 0.0
    %127 = vmatpush2.msra.mxu0 0.0
    %128 = vmatprep.subr.mxu0 0.0
    %129 = vmatpush2.msra.mxu0 0.0
    %130 = vmatprep.subr.mxu0 0.0
    %131 = vmatpush2.msra.mxu0 0.0
    %132 = vmatprep.subr.mxu0 0.0
    %133 = vmatpush2.msra.mxu0 0.0
    %134 = vmatprep.subr.mxu0 0.0
    %135 = vmatpush2.msra.mxu0 0.0
    %136 = vmatprep.subr.mxu0 0.0
    %137 = vmatpush2.msra.mxu0 0.0
    %138 = vmatprep.subr.mxu0 0.0
    %139 = vmatpush2.msra.mxu0 0.0
    %140 = vmatprep.subr.mxu0 0.0
    %141 = vmatpush2.msra.mxu0 0.0
    %142 = vmatprep.subr.mxu0 0.0
    %143 = vmatpush2.msra.mxu0 0.0
    %144 = vmatprep.subr.mxu0 0.0
    %145 = vmatpush2.msra.mxu0 0.0
    %146 = vmatprep.subr.mxu0 0.0
    %147 = vmatpush2.msra.mxu0 0.0
    %148 = vmatprep.subr.mxu0 0.0
    %149 = vmatpush2.msra.mxu0 0.0
    %150 = vmatprep.subr.mxu0 0.0
    %151 = vmatpush2.msra.mxu0 0.0
    %152 = vmatprep.mubr.f32.mxu0 0.0
    %153 = vmatmul.mubr.f32.gmra.mxu0 %v83
    %v154 = vpop.f32.mrf.mxu0
    %v155 = vadd.f32 %v79, %v154
    %v156 = vpop.f32.mrf.mxu0
    %157 = vmatprep.mubr.f32.mxu0 0.0
    %158 = vmatmul.mubr.f32.gmra.mxu0 %v86
    %v159 = vpop.f32.mrf.mxu0
    %v160 = vadd.f32 %v79, %v159
    %v161 = vpop.f32.mrf.mxu0
    %162 = vdwg.mxu0
    %v163 = vld [vmem:[#allocation5] sm:$0xff]
    %v164 = vld [vmem:[#allocation5 + $0x8] sm:$0xff]
    %v165 = vld [vmem:[#allocation5 + $0x10] sm:$0xff]
    %v166 = vld [vmem:[#allocation5 + $0x18] sm:$0xff]
    %v167 = vld [vmem:[#allocation5 + $0x20] sm:$0xff]
    %v168 = vld [vmem:[#allocation5 + $0x28] sm:$0xff]
    %v169 = vld [vmem:[#allocation5 + $0x30] sm:$0xff]
    %v170 = vld [vmem:[#allocation5 + $0x38] sm:$0xff]
    %v171 = vld [vmem:[#allocation5 + $0x40] sm:$0xff]
    %v172 = vld [vmem:[#allocation5 + $0x48] sm:$0xff]
    %v173 = vld [vmem:[#allocation5 + $0x50] sm:$0xff]
    %v174 = vld [vmem:[#allocation5 + $0x58] sm:$0xff]
    %v175 = vld [vmem:[#allocation5 + $0x60] sm:$0xff]
    %v176 = vld [vmem:[#allocation5 + $0x68] sm:$0xff]
    %v177 = vld [vmem:[#allocation5 + $0x70] sm:$0xff]
    %v178 = vld [vmem:[#allocation5 + $0x78] sm:$0xff]
    %179 = vmatprep.subr.mxu0 0.0
    %180 = vmatpush1.msra.mxu0 %v178
    %181 = vmatprep.subr.mxu0 0.0
    %182 = vmatpush1.msra.mxu0 %v177
    %183 = vmatprep.subr.mxu0 0.0
    %184 = vmatpush1.msra.mxu0 %v176
    %185 = vmatprep.subr.mxu0 0.0
    %186 = vmatpush1.msra.mxu0 %v175
    %187 = vmatprep.subr.mxu0 0.0
    %188 = vmatpush1.msra.mxu0 %v174
    %189 = vmatprep.subr.mxu0 0.0
    %190 = vmatpush1.msra.mxu0 %v173
    %191 = vmatprep.subr.mxu0 0.0
    %192 = vmatpush1.msra.mxu0 %v172
    %193 = vmatprep.subr.mxu0 0.0
    %194 = vmatpush1.msra.mxu0 %v171
    %195 = vmatprep.subr.mxu0 0.0
    %196 = vmatpush1.msra.mxu0 %v170
    %197 = vmatprep.subr.mxu0 0.0
    %198 = vmatpush1.msra.mxu0 %v169
    %199 = vmatprep.subr.mxu0 0.0
    %200 = vmatpush1.msra.mxu0 %v168
    %201 = vmatprep.subr.mxu0 0.0
    %202 = vmatpush1.msra.mxu0 %v167
    %203 = vmatprep.subr.mxu0 0.0
    %204 = vmatpush1.msra.mxu0 %v166
    %205 = vmatprep.subr.mxu0 0.0
    %206 = vmatpush1.msra.mxu0 %v165
    %207 = vmatprep.subr.mxu0 0.0
    %208 = vmatpush1.msra.mxu0 %v164
    %209 = vmatprep.subr.mxu0 0.0
    %210 = vmatpush1.msra.mxu0 %v163
    %211 = vmatprep.subr.mxu0 0.0
    %212 = vmatpush2.msra.mxu0 0.0
    %213 = vmatprep.subr.mxu0 0.0
    %214 = vmatpush2.msra.mxu0 0.0
    %215 = vmatprep.subr.mxu0 0.0
    %216 = vmatpush2.msra.mxu0 0.0
    %217 = vmatprep.subr.mxu0 0.0
    %218 = vmatpush2.msra.mxu0 0.0
    %219 = vmatprep.subr.mxu0 0.0
    %220 = vmatpush2.msra.mxu0 0.0
    %221 = vmatprep.subr.mxu0 0.0
    %222 = vmatpush2.msra.mxu0 0.0
    %223 = vmatprep.subr.mxu0 0.0
    %224 = vmatpush2.msra.mxu0 0.0
    %225 = vmatprep.subr.mxu0 0.0
    %226 = vmatpush2.msra.mxu0 0.0
    %227 = vmatprep.subr.mxu0 0.0
    %228 = vmatpush2.msra.mxu0 0.0
    %229 = vmatprep.subr.mxu0 0.0
    %230 = vmatpush2.msra.mxu0 0.0
    %231 = vmatprep.subr.mxu0 0.0
    %232 = vmatpush2.msra.mxu0 0.0
    %233 = vmatprep.subr.mxu0 0.0
    %234 = vmatpush2.msra.mxu0 0.0
    %235 = vmatprep.subr.mxu0 0.0
    %236 = vmatpush2.msra.mxu0 0.0
    %237 = vmatprep.subr.mxu0 0.0
    %238 = vmatpush2.msra.mxu0 0.0
    %239 = vmatprep.subr.mxu0 0.0
    %240 = vmatpush2.msra.mxu0 0.0
    %241 = vmatprep.subr.mxu0 0.0
    %242 = vmatpush2.msra.mxu0 0.0
    %243 = vmatprep.mubr.f32.mxu0 0.0
    %244 = vmatmul.mubr.f32.gmra.mxu0 0.0
    %v245 = vpop.f32.mrf.mxu0
    %v246 = vadd.f32 0.0, %v245
    %v247 = vpop.f32.mrf.mxu0
    %248 = vdwg.mxu0
    %v249 = vadd.f32 %v155, %v246
    %v250 = vtanh.pop %v249
    %251 = vmatprep.subr.mxu0 0.0
    %252 = vmatpush1.msra.mxu0 %v178
    %253 = vmatprep.subr.mxu0 0.0
    %254 = vmatpush1.msra.mxu0 %v177
    %255 = vmatprep.subr.mxu0 0.0
    %256 = vmatpush1.msra.mxu0 %v176
    %257 = vmatprep.subr.mxu0 0.0
    %258 = vmatpush1.msra.mxu0 %v175
    %259 = vmatprep.subr.mxu0 0.0
    %260 = vmatpush1.msra.mxu0 %v174
    %261 = vmatprep.subr.mxu0 0.0
    %262 = vmatpush1.msra.mxu0 %v173
    %263 = vmatprep.subr.mxu0 0.0
    %264 = vmatpush1.msra.mxu0 %v172
    %265 = vmatprep.subr.mxu0 0.0
    %266 = vmatpush1.msra.mxu0 %v171
    %267 = vmatprep.subr.mxu0 0.0
    %268 = vmatpush1.msra.mxu0 %v170
    %269 = vmatprep.subr.mxu0 0.0
    %270 = vmatpush1.msra.mxu0 %v169
    %271 = vmatprep.subr.mxu0 0.0
    %272 = vmatpush1.msra.mxu0 %v168
    %273 = vmatprep.subr.mxu0 0.0
    %274 = vmatpush1.msra.mxu0 %v167
    %275 = vmatprep.subr.mxu0 0.0
    %276 = vmatpush1.msra.mxu0 %v166
    %277 = vmatprep.subr.mxu0 0.0
    %278 = vmatpush1.msra.mxu0 %v165
    %279 = vmatprep.subr.mxu0 0.0
    %280 = vmatpush1.msra.mxu0 %v164
    %281 = vmatprep.subr.mxu0 0.0
    %282 = vmatpush1.msra.mxu0 %v163
    %283 = vmatprep.subr.mxu0 0.0
    %284 = vmatpush2.msra.mxu0 0.0
    %285 = vmatprep.subr.mxu0 0.0
    %286 = vmatpush2.msra.mxu0 0.0
    %287 = vmatprep.subr.mxu0 0.0
    %288 = vmatpush2.msra.mxu0 0.0
    %289 = vmatprep.subr.mxu0 0.0
    %290 = vmatpush2.msra.mxu0 0.0
    %291 = vmatprep.subr.mxu0 0.0
    %292 = vmatpush2.msra.mxu0 0.0
    %293 = vmatprep.subr.mxu0 0.0
    %294 = vmatpush2.msra.mxu0 0.0
    %295 = vmatprep.subr.mxu0 0.0
    %296 = vmatpush2.msra.mxu0 0.0
    %297 = vmatprep.subr.mxu0 0.0
    %298 = vmatpush2.msra.mxu0 0.0
    %299 = vmatprep.subr.mxu0 0.0
    %300 = vmatpush2.msra.mxu0 0.0
    %301 = vmatprep.subr.mxu0 0.0
    %302 = vmatpush2.msra.mxu0 0.0
    %303 = vmatprep.subr.mxu0 0.0
    %304 = vmatpush2.msra.mxu0 0.0
    %305 = vmatprep.subr.mxu0 0.0
    %306 = vmatpush2.msra.mxu0 0.0
    %307 = vmatprep.subr.mxu0 0.0
    %308 = vmatpush2.msra.mxu0 0.0
    %309 = vmatprep.subr.mxu0 0.0
    %310 = vmatpush2.msra.mxu0 0.0
    %311 = vmatprep.subr.mxu0 0.0
    %312 = vmatpush2.msra.mxu0 0.0
    %313 = vmatprep.subr.mxu0 0.0
    %314 = vmatpush2.msra.mxu0 0.0
    %315 = vmatprep.mubr.f32.mxu0 0.0
    %316 = vmatmul.mubr.f32.gmra.mxu0 %v250
    %v317 = vpop.f32.mrf.mxu0
    %v318 = vadd.f32 0.0, %v317
    %v319 = vpop.f32.mrf.mxu0
    %320 = vdwg.mxu0
    %v322 = vrot.slane %v318, 6
    %v324 = vadd.f32 %v155, %v322
    %v325 = vtanh.pop %v324
    %v327 = vrot.slane %v325, 2
    %329 = vmatprep.subr.mxu0 0.0
    %330 = vmatpush1.msra.mxu0 %v178
    %331 = vmatprep.subr.mxu0 0.0
    %332 = vmatpush1.msra.mxu0 %v177
    %333 = vmatprep.subr.mxu0 0.0
    %334 = vmatpush1.msra.mxu0 %v176
    %335 = vmatprep.subr.mxu0 0.0
    %336 = vmatpush1.msra.mxu0 %v175
    %337 = vmatprep.subr.mxu0 0.0
    %338 = vmatpush1.msra.mxu0 %v174
    %339 = vmatprep.subr.mxu0 0.0
    %340 = vmatpush1.msra.mxu0 %v173
    %341 = vmatprep.subr.mxu0 0.0
    %342 = vmatpush1.msra.mxu0 %v172
    %343 = vmatprep.subr.mxu0 0.0
    %344 = vmatpush1.msra.mxu0 %v171
    %345 = vmatprep.subr.mxu0 0.0
    %346 = vmatpush1.msra.mxu0 %v170
    %347 = vmatprep.subr.mxu0 0.0
    %348 = vmatpush1.msra.mxu0 %v169
    %349 = vmatprep.subr.mxu0 0.0
    %350 = vmatpush1.msra.mxu0 %v168
    %351 = vmatprep.subr.mxu0 0.0
    %352 = vmatpush1.msra.mxu0 %v167
    %353 = vmatprep.subr.mxu0 0.0
    %354 = vmatpush1.msra.mxu0 %v166
    %355 = vmatprep.subr.mxu0 0.0
    %356 = vmatpush1.msra.mxu0 %v165
    %357 = vmatprep.subr.mxu0 0.0
    %358 = vmatpush1.msra.mxu0 %v164
    %359 = vmatprep.subr.mxu0 0.0
    %360 = vmatpush1.msra.mxu0 %v163
    %361 = vmatprep.subr.mxu0 0.0
    %362 = vmatpush2.msra.mxu0 0.0
    %363 = vmatprep.subr.mxu0 0.0
    %364 = vmatpush2.msra.mxu0 0.0
    %365 = vmatprep.subr.mxu0 0.0
    %366 = vmatpush2.msra.mxu0 0.0
    %367 = vmatprep.subr.mxu0 0.0
    %368 = vmatpush2.msra.mxu0 0.0
    %369 = vmatprep.subr.mxu0 0.0
    %370 = vmatpush2.msra.mxu0 0.0
    %371 = vmatprep.subr.mxu0 0.0
    %372 = vmatpush2.msra.mxu0 0.0
    %373 = vmatprep.subr.mxu0 0.0
    %374 = vmatpush2.msra.mxu0 0.0
    %375 = vmatprep.subr.mxu0 0.0
    %376 = vmatpush2.msra.mxu0 0.0
    %377 = vmatprep.subr.mxu0 0.0
    %378 = vmatpush2.msra.mxu0 0.0
    %379 = vmatprep.subr.mxu0 0.0
    %380 = vmatpush2.msra.mxu0 0.0
    %381 = vmatprep.subr.mxu0 0.0
    %382 = vmatpush2.msra.mxu0 0.0
    %383 = vmatprep.subr.mxu0 0.0
    %384 = vmatpush2.msra.mxu0 0.0
    %385 = vmatprep.subr.mxu0 0.0
    %386 = vmatpush2.msra.mxu0 0.0
    %387 = vmatprep.subr.mxu0 0.0
    %388 = vmatpush2.msra.mxu0 0.0
    %389 = vmatprep.subr.mxu0 0.0
    %390 = vmatpush2.msra.mxu0 0.0
    %391 = vmatprep.subr.mxu0 0.0
    %392 = vmatpush2.msra.mxu0 0.0
    %393 = vmatprep.mubr.f32.mxu0 0.0
    %394 = vmatmul.mubr.f32.gmra.mxu0 %v327
    %v395 = vpop.f32.mrf.mxu0
    %v396 = vadd.f32 0.0, %v395
    %v397 = vpop.f32.mrf.mxu0
    %398 = vdwg.mxu0
    %v400 = vrot.slane %v396, 4
    %v402 = vadd.f32 %v155, %v400
    %v403 = vtanh.pop %v402
    %v405 = vrot.slane %v403, 4
    %407 = vmatprep.subr.mxu0 0.0
    %408 = vmatpush1.msra.mxu0 %v178
    %409 = vmatprep.subr.mxu0 0.0
    %410 = vmatpush1.msra.mxu0 %v177
    %411 = vmatprep.subr.mxu0 0.0
    %412 = vmatpush1.msra.mxu0 %v176
    %413 = vmatprep.subr.mxu0 0.0
    %414 = vmatpush1.msra.mxu0 %v175
    %415 = vmatprep.subr.mxu0 0.0
    %416 = vmatpush1.msra.mxu0 %v174
    %417 = vmatprep.subr.mxu0 0.0
    %418 = vmatpush1.msra.mxu0 %v173
    %419 = vmatprep.subr.mxu0 0.0
    %420 = vmatpush1.msra.mxu0 %v172
    %421 = vmatprep.subr.mxu0 0.0
    %422 = vmatpush1.msra.mxu0 %v171
    %423 = vmatprep.subr.mxu0 0.0
    %424 = vmatpush1.msra.mxu0 %v170
    %425 = vmatprep.subr.mxu0 0.0
    %426 = vmatpush1.msra.mxu0 %v169
    %427 = vmatprep.subr.mxu0 0.0
    %428 = vmatpush1.msra.mxu0 %v168
    %429 = vmatprep.subr.mxu0 0.0
    %430 = vmatpush1.msra.mxu0 %v167
    %431 = vmatprep.subr.mxu0 0.0
    %432 = vmatpush1.msra.mxu0 %v166
    %433 = vmatprep.subr.mxu0 0.0
    %434 = vmatpush1.msra.mxu0 %v165
    %435 = vmatprep.subr.mxu0 0.0
    %436 = vmatpush1.msra.mxu0 %v164
    %437 = vmatprep.subr.mxu0 0.0
    %438 = vmatpush1.msra.mxu0 %v163
    %439 = vmatprep.subr.mxu0 0.0
    %440 = vmatpush2.msra.mxu0 0.0
    %441 = vmatprep.subr.mxu0 0.0
    %442 = vmatpush2.msra.mxu0 0.0
    %443 = vmatprep.subr.mxu0 0.0
    %444 = vmatpush2.msra.mxu0 0.0
    %445 = vmatprep.subr.mxu0 0.0
    %446 = vmatpush2.msra.mxu0 0.0
    %447 = vmatprep.subr.mxu0 0.0
    %448 = vmatpush2.msra.mxu0 0.0
    %449 = vmatprep.subr.mxu0 0.0
    %450 = vmatpush2.msra.mxu0 0.0
    %451 = vmatprep.subr.mxu0 0.0
    %452 = vmatpush2.msra.mxu0 0.0
    %453 = vmatprep.subr.mxu0 0.0
    %454 = vmatpush2.msra.mxu0 0.0
    %455 = vmatprep.subr.mxu0 0.0
    %456 = vmatpush2.msra.mxu0 0.0
    %457 = vmatprep.subr.mxu0 0.0
    %458 = vmatpush2.msra.mxu0 0.0
    %459 = vmatprep.subr.mxu0 0.0
    %460 = vmatpush2.msra.mxu0 0.0
    %461 = vmatprep.subr.mxu0 0.0
    %462 = vmatpush2.msra.mxu0 0.0
    %463 = vmatprep.subr.mxu0 0.0
    %464 = vmatpush2.msra.mxu0 0.0
    %465 = vmatprep.subr.mxu0 0.0
    %466 = vmatpush2.msra.mxu0 0.0
    %467 = vmatprep.subr.mxu0 0.0
    %468 = vmatpush2.msra.mxu0 0.0
    %469 = vmatprep.subr.mxu0 0.0
    %470 = vmatpush2.msra.mxu0 0.0
    %471 = vmatprep.mubr.f32.mxu0 0.0
    %472 = vmatmul.mubr.f32.gmra.mxu0 %v405
    %v473 = vpop.f32.mrf.mxu0
    %v474 = vadd.f32 0.0, %v473
    %v475 = vpop.f32.mrf.mxu0
    %476 = vdwg.mxu0
    %v478 = vrot.slane %v474, 2
    %v480 = vadd.f32 %v155, %v478
    %v481 = vtanh.pop %v480
    %v483 = vrot.slane %v481, 6
    %485 = vmatprep.subr.mxu0 0.0
    %486 = vmatpush1.msra.mxu0 %v178
    %487 = vmatprep.subr.mxu0 0.0
    %488 = vmatpush1.msra.mxu0 %v177
    %489 = vmatprep.subr.mxu0 0.0
    %490 = vmatpush1.msra.mxu0 %v176
    %491 = vmatprep.subr.mxu0 0.0
    %492 = vmatpush1.msra.mxu0 %v175
    %493 = vmatprep.subr.mxu0 0.0
    %494 = vmatpush1.msra.mxu0 %v174
    %495 = vmatprep.subr.mxu0 0.0
    %496 = vmatpush1.msra.mxu0 %v173
    %497 = vmatprep.subr.mxu0 0.0
    %498 = vmatpush1.msra.mxu0 %v172
    %499 = vmatprep.subr.mxu0 0.0
    %500 = vmatpush1.msra.mxu0 %v171
    %501 = vmatprep.subr.mxu0 0.0
    %502 = vmatpush1.msra.mxu0 %v170
    %503 = vmatprep.subr.mxu0 0.0
    %504 = vmatpush1.msra.mxu0 %v169
    %505 = vmatprep.subr.mxu0 0.0
    %506 = vmatpush1.msra.mxu0 %v168
    %507 = vmatprep.subr.mxu0 0.0
    %508 = vmatpush1.msra.mxu0 %v167
    %509 = vmatprep.subr.mxu0 0.0
    %510 = vmatpush1.msra.mxu0 %v166
    %511 = vmatprep.subr.mxu0 0.0
    %512 = vmatpush1.msra.mxu0 %v165
    %513 = vmatprep.subr.mxu0 0.0
    %514 = vmatpush1.msra.mxu0 %v164
    %515 = vmatprep.subr.mxu0 0.0
    %516 = vmatpush1.msra.mxu0 %v163
    %517 = vmatprep.subr.mxu0 0.0
    %518 = vmatpush2.msra.mxu0 0.0
    %519 = vmatprep.subr.mxu0 0.0
    %520 = vmatpush2.msra.mxu0 0.0
    %521 = vmatprep.subr.mxu0 0.0
    %522 = vmatpush2.msra.mxu0 0.0
    %523 = vmatprep.subr.mxu0 0.0
    %524 = vmatpush2.msra.mxu0 0.0
    %525 = vmatprep.subr.mxu0 0.0
    %526 = vmatpush2.msra.mxu0 0.0
    %527 = vmatprep.subr.mxu0 0.0
    %528 = vmatpush2.msra.mxu0 0.0
    %529 = vmatprep.subr.mxu0 0.0
    %530 = vmatpush2.msra.mxu0 0.0
    %531 = vmatprep.subr.mxu0 0.0
    %532 = vmatpush2.msra.mxu0 0.0
    %533 = vmatprep.subr.mxu0 0.0
    %534 = vmatpush2.msra.mxu0 0.0
    %535 = vmatprep.subr.mxu0 0.0
    %536 = vmatpush2.msra.mxu0 0.0
    %537 = vmatprep.subr.mxu0 0.0
    %538 = vmatpush2.msra.mxu0 0.0
    %539 = vmatprep.subr.mxu0 0.0
    %540 = vmatpush2.msra.mxu0 0.0
    %541 = vmatprep.subr.mxu0 0.0
    %542 = vmatpush2.msra.mxu0 0.0
    %543 = vmatprep.subr.mxu0 0.0
    %544 = vmatpush2.msra.mxu0 0.0
    %545 = vmatprep.subr.mxu0 0.0
    %546 = vmatpush2.msra.mxu0 0.0
    %547 = vmatprep.subr.mxu0 0.0
    %548 = vmatpush2.msra.mxu0 0.0
    %549 = vmatprep.mubr.f32.mxu0 0.0
    %550 = vmatmul.mubr.f32.gmra.mxu0 %v483
    %v551 = vpop.f32.mrf.mxu0
    %v552 = vadd.f32 0.0, %v551
    %v553 = vpop.f32.mrf.mxu0
    %554 = vdwg.mxu0
    %v555 = vadd.f32 %v160, %v552
    %v556 = vtanh.pop %v555
    %557 = vmatprep.subr.mxu0 0.0
    %558 = vmatpush1.msra.mxu0 %v178
    %559 = vmatprep.subr.mxu0 0.0
    %560 = vmatpush1.msra.mxu0 %v177
    %561 = vmatprep.subr.mxu0 0.0
    %562 = vmatpush1.msra.mxu0 %v176
    %563 = vmatprep.subr.mxu0 0.0
    %564 = vmatpush1.msra.mxu0 %v175
    %565 = vmatprep.subr.mxu0 0.0
    %566 = vmatpush1.msra.mxu0 %v174
    %567 = vmatprep.subr.mxu0 0.0
    %568 = vmatpush1.msra.mxu0 %v173
    %569 = vmatprep.subr.mxu0 0.0
    %570 = vmatpush1.msra.mxu0 %v172
    %571 = vmatprep.subr.mxu0 0.0
    %572 = vmatpush1.msra.mxu0 %v171
    %573 = vmatprep.subr.mxu0 0.0
    %574 = vmatpush1.msra.mxu0 %v170
    %575 = vmatprep.subr.mxu0 0.0
    %576 = vmatpush1.msra.mxu0 %v169
    %577 = vmatprep.subr.mxu0 0.0
    %578 = vmatpush1.msra.mxu0 %v168
    %579 = vmatprep.subr.mxu0 0.0
    %580 = vmatpush1.msra.mxu0 %v167
    %581 = vmatprep.subr.mxu0 0.0
    %582 = vmatpush1.msra.mxu0 %v166
    %583 = vmatprep.subr.mxu0 0.0
    %584 = vmatpush1.msra.mxu0 %v165
    %585 = vmatprep.subr.mxu0 0.0
    %586 = vmatpush1.msra.mxu0 %v164
    %587 = vmatprep.subr.mxu0 0.0
    %588 = vmatpush1.msra.mxu0 %v163
    %589 = vmatprep.subr.mxu0 0.0
    %590 = vmatpush2.msra.mxu0 0.0
    %591 = vmatprep.subr.mxu0 0.0
    %592 = vmatpush2.msra.mxu0 0.0
    %593 = vmatprep.subr.mxu0 0.0
    %594 = vmatpush2.msra.mxu0 0.0
    %595 = vmatprep.subr.mxu0 0.0
    %596 = vmatpush2.msra.mxu0 0.0
    %597 = vmatprep.subr.mxu0 0.0
    %598 = vmatpush2.msra.mxu0 0.0
    %599 = vmatprep.subr.mxu0 0.0
    %600 = vmatpush2.msra.mxu0 0.0
    %601 = vmatprep.subr.mxu0 0.0
    %602 = vmatpush2.msra.mxu0 0.0
    %603 = vmatprep.subr.mxu0 0.0
    %604 = vmatpush2.msra.mxu0 0.0
    %605 = vmatprep.subr.mxu0 0.0
    %606 = vmatpush2.msra.mxu0 0.0
    %607 = vmatprep.subr.mxu0 0.0
    %608 = vmatpush2.msra.mxu0 0.0
    %609 = vmatprep.subr.mxu0 0.0
    %610 = vmatpush2.msra.mxu0 0.0
    %611 = vmatprep.subr.mxu0 0.0
    %612 = vmatpush2.msra.mxu0 0.0
    %613 = vmatprep.subr.mxu0 0.0
    %614 = vmatpush2.msra.mxu0 0.0
    %615 = vmatprep.subr.mxu0 0.0
    %616 = vmatpush2.msra.mxu0 0.0
    %617 = vmatprep.subr.mxu0 0.0
    %618 = vmatpush2.msra.mxu0 0.0
    %619 = vmatprep.subr.mxu0 0.0
    %620 = vmatpush2.msra.mxu0 0.0
    %621 = vmatprep.mubr.f32.mxu0 0.0
    %622 = vmatmul.mubr.f32.gmra.mxu0 %v556
    %v623 = vpop.f32.mrf.mxu0
    %v624 = vadd.f32 0.0, %v623
    %v625 = vpop.f32.mrf.mxu0
    %626 = vdwg.mxu0
    %v628 = vrot.slane %v624, 6
    %v630 = vadd.f32 %v160, %v628
    %v631 = vtanh.pop %v630
    %v633 = vrot.slane %v631, 2
    %635 = vmatprep.subr.mxu0 0.0
    %636 = vmatpush1.msra.mxu0 %v178
    %637 = vmatprep.subr.mxu0 0.0
    %638 = vmatpush1.msra.mxu0 %v177
    %639 = vmatprep.subr.mxu0 0.0
    %640 = vmatpush1.msra.mxu0 %v176
    %641 = vmatprep.subr.mxu0 0.0
    %642 = vmatpush1.msra.mxu0 %v175
    %643 = vmatprep.subr.mxu0 0.0
    %644 = vmatpush1.msra.mxu0 %v174
    %645 = vmatprep.subr.mxu0 0.0
    %646 = vmatpush1.msra.mxu0 %v173
    %647 = vmatprep.subr.mxu0 0.0
    %648 = vmatpush1.msra.mxu0 %v172
    %649 = vmatprep.subr.mxu0 0.0
    %650 = vmatpush1.msra.mxu0 %v171
    %651 = vmatprep.subr.mxu0 0.0
    %652 = vmatpush1.msra.mxu0 %v170
    %653 = vmatprep.subr.mxu0 0.0
    %654 = vmatpush1.msra.mxu0 %v169
    %655 = vmatprep.subr.mxu0 0.0
    %656 = vmatpush1.msra.mxu0 %v168
    %657 = vmatprep.subr.mxu0 0.0
    %658 = vmatpush1.msra.mxu0 %v167
    %659 = vmatprep.subr.mxu0 0.0
    %660 = vmatpush1.msra.mxu0 %v166
    %661 = vmatprep.subr.mxu0 0.0
    %662 = vmatpush1.msra.mxu0 %v165
    %663 = vmatprep.subr.mxu0 0.0
    %664 = vmatpush1.msra.mxu0 %v164
    %665 = vmatprep.subr.mxu0 0.0
    %666 = vmatpush1.msra.mxu0 %v163
    %667 = vmatprep.subr.mxu0 0.0
    %668 = vmatpush2.msra.mxu0 0.0
    %669 = vmatprep.subr.mxu0 0.0
    %670 = vmatpush2.msra.mxu0 0.0
    %671 = vmatprep.subr.mxu0 0.0
    %672 = vmatpush2.msra.mxu0 0.0
    %673 = vmatprep.subr.mxu0 0.0
    %674 = vmatpush2.msra.mxu0 0.0
    %675 = vmatprep.subr.mxu0 0.0
    %676 = vmatpush2.msra.mxu0 0.0
    %677 = vmatprep.subr.mxu0 0.0
    %678 = vmatpush2.msra.mxu0 0.0
    %679 = vmatprep.subr.mxu0 0.0
    %680 = vmatpush2.msra.mxu0 0.0
    %681 = vmatprep.subr.mxu0 0.0
    %682 = vmatpush2.msra.mxu0 0.0
    %683 = vmatprep.subr.mxu0 0.0
    %684 = vmatpush2.msra.mxu0 0.0
    %685 = vmatprep.subr.mxu0 0.0
    %686 = vmatpush2.msra.mxu0 0.0
    %687 = vmatprep.subr.mxu0 0.0
    %688 = vmatpush2.msra.mxu0 0.0
    %689 = vmatprep.subr.mxu0 0.0
    %690 = vmatpush2.msra.mxu0 0.0
    %691 = vmatprep.subr.mxu0 0.0
    %692 = vmatpush2.msra.mxu0 0.0
    %693 = vmatprep.subr.mxu0 0.0
    %694 = vmatpush2.msra.mxu0 0.0
    %695 = vmatprep.subr.mxu0 0.0
    %696 = vmatpush2.msra.mxu0 0.0
    %697 = vmatprep.subr.mxu0 0.0
    %698 = vmatpush2.msra.mxu0 0.0
    %699 = vmatprep.mubr.f32.mxu0 0.0
    %700 = vmatmul.mubr.f32.gmra.mxu0 %v633
    %v701 = vpop.f32.mrf.mxu0
    %v702 = vadd.f32 0.0, %v701
    %v703 = vpop.f32.mrf.mxu0
    %704 = vdwg.mxu0
    %v706 = vrot.slane %v702, 4
    %v708 = vadd.f32 %v160, %v706
    %v709 = vtanh.pop %v708
    %v711 = vrot.slane %v709, 4
    %713 = vmatprep.subr.mxu0 0.0
    %714 = vmatpush1.msra.mxu0 %v178
    %715 = vmatprep.subr.mxu0 0.0
    %716 = vmatpush1.msra.mxu0 %v177
    %717 = vmatprep.subr.mxu0 0.0
    %718 = vmatpush1.msra.mxu0 %v176
    %719 = vmatprep.subr.mxu0 0.0
    %720 = vmatpush1.msra.mxu0 %v175
    %721 = vmatprep.subr.mxu0 0.0
    %722 = vmatpush1.msra.mxu0 %v174
    %723 = vmatprep.subr.mxu0 0.0
    %724 = vmatpush1.msra.mxu0 %v173
    %725 = vmatprep.subr.mxu0 0.0
    %726 = vmatpush1.msra.mxu0 %v172
    %727 = vmatprep.subr.mxu0 0.0
    %728 = vmatpush1.msra.mxu0 %v171
    %729 = vmatprep.subr.mxu0 0.0
    %730 = vmatpush1.msra.mxu0 %v170
    %731 = vmatprep.subr.mxu0 0.0
    %732 = vmatpush1.msra.mxu0 %v169
    %733 = vmatprep.subr.mxu0 0.0
    %734 = vmatpush1.msra.mxu0 %v168
    %735 = vmatprep.subr.mxu0 0.0
    %736 = vmatpush1.msra.mxu0 %v167
    %737 = vmatprep.subr.mxu0 0.0
    %738 = vmatpush1.msra.mxu0 %v166
    %739 = vmatprep.subr.mxu0 0.0
    %740 = vmatpush1.msra.mxu0 %v165
    %741 = vmatprep.subr.mxu0 0.0
    %742 = vmatpush1.msra.mxu0 %v164
    %743 = vmatprep.subr.mxu0 0.0
    %744 = vmatpush1.msra.mxu0 %v163
    %745 = vmatprep.subr.mxu0 0.0
    %746 = vmatpush2.msra.mxu0 0.0
    %747 = vmatprep.subr.mxu0 0.0
    %748 = vmatpush2.msra.mxu0 0.0
    %749 = vmatprep.subr.mxu0 0.0
    %750 = vmatpush2.msra.mxu0 0.0
    %751 = vmatprep.subr.mxu0 0.0
    %752 = vmatpush2.msra.mxu0 0.0
    %753 = vmatprep.subr.mxu0 0.0
    %754 = vmatpush2.msra.mxu0 0.0
    %755 = vmatprep.subr.mxu0 0.0
    %756 = vmatpush2.msra.mxu0 0.0
    %757 = vmatprep.subr.mxu0 0.0
    %758 = vmatpush2.msra.mxu0 0.0
    %759 = vmatprep.subr.mxu0 0.0
    %760 = vmatpush2.msra.mxu0 0.0
    %761 = vmatprep.subr.mxu0 0.0
    %762 = vmatpush2.msra.mxu0 0.0
    %763 = vmatprep.subr.mxu0 0.0
    %764 = vmatpush2.msra.mxu0 0.0
    %765 = vmatprep.subr.mxu0 0.0
    %766 = vmatpush2.msra.mxu0 0.0
    %767 = vmatprep.subr.mxu0 0.0
    %768 = vmatpush2.msra.mxu0 0.0
    %769 = vmatprep.subr.mxu0 0.0
    %770 = vmatpush2.msra.mxu0 0.0
    %771 = vmatprep.subr.mxu0 0.0
    %772 = vmatpush2.msra.mxu0 0.0
    %773 = vmatprep.subr.mxu0 0.0
    %774 = vmatpush2.msra.mxu0 0.0
    %775 = vmatprep.subr.mxu0 0.0
    %776 = vmatpush2.msra.mxu0 0.0
    %777 = vmatprep.mubr.f32.mxu0 0.0
    %778 = vmatmul.mubr.f32.gmra.mxu0 %v711
    %v779 = vpop.f32.mrf.mxu0
    %v780 = vadd.f32 0.0, %v779
    %v781 = vpop.f32.mrf.mxu0
    %782 = vdwg.mxu0
    %v784 = vrot.slane %v780, 2
    %v786 = vadd.f32 %v160, %v784
    %v787 = vtanh.pop %v786
    %vm788 = vcmask 1041408
    %v789 = vsel %vm788, %v250, %v325
    %vm790 = vcmask 1043456
    %v791 = vsel %vm790, %v789, %v403
    %vm792 = vcmask 1045504
    %v793 = vsel %vm792, %v791, %v481
    %v794 = vsel %vm788, %v556, %v631
    %v795 = vsel %vm790, %v794, %v709
    %v796 = vsel %vm792, %v795, %v787
    %v797 = vld [vmem:[#allocation7] sm:$0xff]
    %v798 = vld [vmem:[#allocation7 + $0x8] sm:$0xff]
    %v799 = vld [vmem:[#allocation7 + $0x10] sm:$0xff]
    %v800 = vld [vmem:[#allocation7 + $0x18] sm:$0xff]
    %v801 = vld [vmem:[#allocation7 + $0x20] sm:$0xff]
    %v802 = vld [vmem:[#allocation7 + $0x28] sm:$0xff]
    %v803 = vld [vmem:[#allocation7 + $0x30] sm:$0xff]
    %v804 = vld [vmem:[#allocation7 + $0x38] sm:$0xff]
    %v805 = vld [vmem:[#allocation7 + $0x40] sm:$0xff]
    %v806 = vld [vmem:[#allocation7 + $0x48] sm:$0xff]
    %v807 = vld [vmem:[#allocation7 + $0x50] sm:$0xff]
    %v808 = vld [vmem:[#allocation7 + $0x58] sm:$0xff]
    %v809 = vld [vmem:[#allocation7 + $0x60] sm:$0xff]
    %v810 = vld [vmem:[#allocation7 + $0x68] sm:$0xff]
    %v811 = vld [vmem:[#allocation7 + $0x70] sm:$0xff]
    %v812 = vld [vmem:[#allocation7 + $0x78] sm:$0xff]
    %v813 = vld [vmem:[%s6] sm:$0x1]
    %v815 = vlaneseq
    %v816 = vshrl.u32 %v815, 7
    %v817 = vsub.s32 0, %v816
    %v818 = vrot.slane %v813, %v817
    %820 = vmatprep.subr.mxu0 0.0
    %821 = vmatpush1.msra.mxu0 %v812
    %822 = vmatprep.subr.mxu0 0.0
    %823 = vmatpush1.msra.mxu0 %v811
    %824 = vmatprep.subr.mxu0 0.0
    %825 = vmatpush1.msra.mxu0 %v810
    %826 = vmatprep.subr.mxu0 0.0
    %827 = vmatpush1.msra.mxu0 %v809
    %828 = vmatprep.subr.mxu0 0.0
    %829 = vmatpush1.msra.mxu0 %v808
    %830 = vmatprep.subr.mxu0 0.0
    %831 = vmatpush1.msra.mxu0 %v807
    %832 = vmatprep.subr.mxu0 0.0
    %833 = vmatpush1.msra.mxu0 %v806
    %834 = vmatprep.subr.mxu0 0.0
    %835 = vmatpush1.msra.mxu0 %v805
    %836 = vmatprep.subr.mxu0 0.0
    %837 = vmatpush1.msra.mxu0 %v804
    %838 = vmatprep.subr.mxu0 0.0
    %839 = vmatpush1.msra.mxu0 %v803
    %840 = vmatprep.subr.mxu0 0.0
    %841 = vmatpush1.msra.mxu0 %v802
    %842 = vmatprep.subr.mxu0 0.0
    %843 = vmatpush1.msra.mxu0 %v801
    %844 = vmatprep.subr.mxu0 0.0
    %845 = vmatpush1.msra.mxu0 %v800
    %846 = vmatprep.subr.mxu0 0.0
    %847 = vmatpush1.msra.mxu0 %v799
    %848 = vmatprep.subr.mxu0 0.0
    %849 = vmatpush1.msra.mxu0 %v798
    %850 = vmatprep.subr.mxu0 0.0
    %851 = vmatpush1.msra.mxu0 %v797
    %852 = vmatprep.subr.mxu0 0.0
    %853 = vmatpush2.msra.mxu0 0.0
    %854 = vmatprep.subr.mxu0 0.0
    %855 = vmatpush2.msra.mxu0 0.0
    %856 = vmatprep.subr.mxu0 0.0
    %857 = vmatpush2.msra.mxu0 0.0
    %858 = vmatprep.subr.mxu0 0.0
    %859 = vmatpush2.msra.mxu0 0.0
    %860 = vmatprep.subr.mxu0 0.0
    %861 = vmatpush2.msra.mxu0 0.0
    %862 = vmatprep.subr.mxu0 0.0
    %863 = vmatpush2.msra.mxu0 0.0
    %864 = vmatprep.subr.mxu0 0.0
    %865 = vmatpush2.msra.mxu0 0.0
    %866 = vmatprep.subr.mxu0 0.0
    %867 = vmatpush2.msra.mxu0 0.0
    %868 = vmatprep.subr.mxu0 0.0
    %869 = vmatpush2.msra.mxu0 0.0
    %870 = vmatprep.subr.mxu0 0.0
    %871 = vmatpush2.msra.mxu0 0.0
    %872 = vmatprep.subr.mxu0 0.0
    %873 = vmatpush2.msra.mxu0 0.0
    %874 = vmatprep.subr.mxu0 0.0
    %875 = vmatpush2.msra.mxu0 0.0
    %876 = vmatprep.subr.mxu0 0.0
    %877 = vmatpush2.msra.mxu0 0.0
    %878 = vmatprep.subr.mxu0 0.0
    %879 = vmatpush2.msra.mxu0 0.0
    %880 = vmatprep.subr.mxu0 0.0
    %881 = vmatpush2.msra.mxu0 0.0
    %882 = vmatprep.subr.mxu0 0.0
    %883 = vmatpush2.msra.mxu0 0.0
    %884 = vmatprep.mubr.f32.mxu0 0.0
    %885 = vmatmul.mubr.f32.gmra.mxu0 %v793
    %v886 = vpop.f32.mrf.mxu0
    %v887 = vadd.f32 %v818, %v886
    %v888 = vpop.f32.mrf.mxu0
    %889 = vmatprep.mubr.f32.mxu0 0.0
    %890 = vmatmul.mubr.f32.gmra.mxu0 %v796
    %v891 = vpop.f32.mrf.mxu0
    %v892 = vadd.f32 %v818, %v891
    %v893 = vpop.f32.mrf.mxu0
    %894 = vdwg.mxu0
    %895 = vmax.xlane.f32.xlu0 %v887
    %v896 = vpop.xlane.xlu0 %895
    %897 = vmax.xlane.f32.xlu0 %v892
    %v898 = vpop.xlane.xlu0 %897
    %v899 = vsub.f32 %v887, %v896
    %v900 = vsub.f32 %v892, %v898
    %v901 = vmul.f32 %v899, 1.442695
    %v902 = vpow.pop %v901
    %v903 = vmul.f32 %v900, 1.442695
    %v904 = vpow.pop %v903
    %905 = vadd.xlane.f32.xlu0 %v902
    %v906 = vpop.xlane.xlu0 %905
    %907 = vadd.xlane.f32.xlu0 %v904
    %v908 = vpop.xlane.xlu0 %907
    %v909 = vlog2.pop %v906
    %v910 = vmul.f32 %v909, 0.6931472
    %v911 = vlog2.pop %v908
    %v912 = vmul.f32 %v911, 0.6931472
    %v913 = vadd.f32 %v896, %v910
    %v914 = vadd.f32 %v898, %v912
    %v915 = vlaneseq
    %v916 = vand.u32 %v915, 127
    %v917 = vld [vmem:[%s1] sm:$0xff]
    %v918 = vld [vmem:[%s1 + $0x8] sm:$0xff]
    %919 = vset.pattern.permute.xlu0 0
    %920 = vperm.xlu0 %919, %v917
    %v921 = vpop.permute.xlu0 %920
    %922 = vset.pattern.permute.xlu0 0
    %923 = vperm.xlu0 %922, %v918
    %v924 = vpop.permute.xlu0 %923
    %vm925 = vcmp.eq.s32.totalorder %v916, %v921
    %vm926 = vcmp.eq.s32.totalorder %v916, %v924
    %v927 = vsel %vm925, %v887, 0.0
    %v928 = vsel %vm926, %v892, 0.0
    %929 = vadd.xlane.f32.xlu0 %v927
    %v930 = vpop.xlane.xlu0 %929
    %931 = vadd.xlane.f32.xlu0 %v928
    %v932 = vpop.xlane.xlu0 %931
    %v933 = vsub.f32 %v913, %v930
    %v934 = vsub.f32 %v914, %v932
    %v935 = vadd.f32 %v933, %v934
    %v936 = vrot.slane %v935, 4
    %v937 = vadd.f32 %v935, %v936
    %v938 = vrot.slane %v937, 2
    %v939 = vadd.f32 %v937, %v938
    %v940 = vrot.slane %v939, 1
    %v941 = vadd.f32 %v939, %v940
    %v942 = vrcp.pop 16.0
    %v943 = vmul.f32 %v941, %v942
    %vm944 = vcmask 0
    %945 = vst.msk [vmem:[#allocation8] sm:$0x1] %vm944, %v943
    // Predicated region
    $region42: #{tpu_custom_call.1} parent=1 // pred_check
      _
    $region43: #{tpu_custom_call.1} parent=1 // pred_check_branch
      %947 = sbr.rel (0) target = $region45
    $region44: #{tpu_custom_call.1} parent=1 // pred_region
      %s949 = ssub.s32 16, 16
      %950 = vsyncadd [#allocation4], %s949
      %s952 = sshll.u32 [#allocation8], 4
      %s953 = int_to_ptr.vmem [resolvable:$true] %s952
      %955 = dma.vmem_to_hbm [thread:$0]  %s953, 16, %s7, [#allocation4]
    $region45: #{tpu_custom_call.1} parent=1 // pred_fallthru
      _
    // Predicated region
    $region46: #{tpu_custom_call.1} parent=1 // pred_check
      _
    $region47: #{tpu_custom_call.1} parent=1 // pred_check_branch
      %957 = sbr.rel (0) target = $region49
    $region48: #{tpu_custom_call.1} parent=1 // pred_region
      %958 = dma.done [#allocation4], 16
    $region49: #{tpu_custom_call.1} parent=1 // pred_fallthru
      _
    %959 = vsyncpa [#allocation3], 1
    %960 = vsyncpa [#allocation6], 1
    %961 = vsyncpa [#allocation4], 1

</llo_original>
